<compile_context>
chip_gen: v7x
topology: tpu7x:2x2x1
jax: 0.10.0
libtpu: 0.0.40
codegen_flags: <defaults>
</compile_context>

<pallas_src>
import jax
import jax.numpy as jnp
from jax import lax
from jax.experimental import pallas as pl
from jax.experimental.pallas import tpu as pltpu


# murmur3 / fmix32 constants as wrapped int32 values.
_GOLD = -1640531535   # 0x9E3779B1
_C1 = -2048144789     # 0x85EBCA6B
_C2 = -1028477387     # 0xC2B2AE35
_INT31_MAX = 2147483647


def _fmix32(h):
    """murmur3 finalizer on int32 (logical right shift = arith shift + mask)."""
    h = h ^ ((h >> 16) & 0xFFFF)
    h = h * _C1
    h = h ^ ((h >> 13) & 0x7FFFF)
    h = h * _C2
    h = h ^ ((h >> 16) & 0xFFFF)
    return h


def _spectral_mask_kernel(seed_ref, thresh_ref, x_ref, o_ref):
    # x_ref / o_ref: (TILE_ROWS, HW) tile; thresh_ref: (TILE_ROWS, 1) int32.
    tile_rows, hw = x_ref.shape
    row0 = pl.program_id(0) * tile_rows

    rows = lax.broadcasted_iota(jnp.int32, (tile_rows, hw), 0) + row0
    cols = lax.broadcasted_iota(jnp.int32, (tile_rows, hw), 1)
    idx = rows * hw + cols                      # global element index (grid-invariant)

    h = _fmix32(idx ^ (seed_ref[0] * _GOLD))    # counter-based hash of (seed, idx)
    bits31 = h & _INT31_MAX                     # uniform int in [0, 2^31)

    keep = bits31 <= thresh_ref[...]            # (TILE_ROWS, 1) broadcasts over lanes
    o_ref[...] = jnp.where(keep, x_ref[...], jnp.zeros((), x_ref.dtype))


def random_spectral_mask(x, seed, *, mask_prob=0.5, p=0.5, training=True):
    """JAX/Pallas equivalent of RandomSpectralMask.forward."""
    if (not training) or mask_prob == 0:
        return x

    B, C, H, W = x.shape
    HW = H * W
    R = B * C
    # TODO(synk): if HW % 128 != 0 the lane dim is ragged (masked stores); a
    # further flatten/pad to a 128-multiple lane width would be needed for
    # peak store bandwidth in that case.
    x2 = x.reshape(R, HW)

    # Per-batch "keep everything" draw, hoisted out of the kernel and folded
    # into a per-row threshold:  keep pixel iff  hash_bits31 <= thresh[row].
    batch_keep = jax.random.uniform(jax.random.PRNGKey(seed), (B,)) < mask_prob
    p_thresh = min(max(int(round(p * 2.0 ** 31)) - 1, -1), _INT31_MAX)
    thresh_b = jnp.where(batch_keep, jnp.int32(_INT31_MAX), jnp.int32(p_thresh))
    thresh_rows = jnp.broadcast_to(thresh_b[:, None], (B, C)).reshape(R, 1)

    # Row tiling: HW stays on the lane axis; take as many rows as fit ~2 MiB
    # per input tile (double-buffered in + out => ~8 MiB VMEM, fits every gen,
    # incl. v7x's 64 MiB / v5e's 16 MiB default scoped limit).
    bytes_per_row = HW * x.dtype.itemsize
    max_rows = max(8, (2 * 1024 * 1024) // bytes_per_row)
    if R <= max_rows:
        tile_rows = R                              # full-dim block: always legal
    else:
        tile_rows = max(8, min(512, (max_rows // 8) * 8))
    grid = (pl.cdiv(R, tile_rows),)

    out2 = pl.pallas_call(
        _spectral_mask_kernel,
        out_shape=jax.ShapeDtypeStruct((R, HW), x.dtype),
        grid_spec=pltpu.PrefetchScalarGridSpec(
            num_scalar_prefetch=1,                 # seed lands in SMEM
            grid=grid,
            in_specs=[
                pl.BlockSpec((tile_rows, 1), lambda i, s: (i, 0)),    # per-row thresh
                pl.BlockSpec((tile_rows, HW), lambda i, s: (i, 0)),   # x tile
            ],
            out_specs=pl.BlockSpec((tile_rows, HW), lambda i, s: (i, 0)),
        ),
        compiler_params=pltpu.CompilerParams(
            dimension_semantics=("parallel",),     # independent tiles (v7x: 2 TCs)
        ),
    )(jnp.asarray([seed], dtype=jnp.int32), thresh_rows, x2)

    return out2.reshape(B, C, H, W)


if __name__ == "__main__":
    key = jax.random.PRNGKey(0)
    B, C, H, W = 2, 4, 16, 16
    x = jax.random.normal(key, (B, C, H, W), dtype=jnp.float32)

    out = random_spectral_mask(x, seed=42, mask_prob=0.5, p=0.5, training=True)
    out = jax.block_until_ready(out)

    assert out.shape == x.shape and out.dtype == x.dtype
    # Every output element is either 0 or exactly the input (x * binary mask).
    assert bool(jnp.all(jnp.logical_or(out == 0.0, out == x))), "not x * binary mask"

    # Eval / mask_prob == 0 path is the identity (handled in the wrapper).
    assert bool(jnp.all(random_spectral_mask(x, seed=42, training=False) == x))
    assert bool(jnp.all(random_spectral_mask(x, seed=42, mask_prob=0.0) == x))

    print("KERNEL_OK")
</pallas_src>

<mosaic_0001>
module attributes {stable_mosaic.version = 11 : i64} {
  func.func @_spectral_mask_kernel(%arg0: i32, %arg1: memref<1xi32, #tpu.memory_space<smem>>, %arg2: memref<8x1xi32, #tpu.memory_space<vmem>>, %arg3: memref<8x256xf32, #tpu.memory_space<vmem>>, %arg4: memref<8x256xf32, #tpu.memory_space<vmem>>) attributes {dimension_semantics = [#tpu.dimension_semantics<parallel>], iteration_bounds = array<i64: 1>, scalar_prefetch = 1 : i64, scratch_operands = 0 : i64, tpu.core_type = #tpu.core_type<tc>, window_params = [{transform_indices = @transform_0, window_bounds = array<i64: 8, 1>}, {transform_indices = @transform_1, window_bounds = array<i64: 8, 256>}, {transform_indices = @transform_2, window_bounds = array<i64: 8, 256>}]} {
    %c8_i32 = arith.constant 8 : i32
    %0 = arith.muli %arg0, %c8_i32 : i32
    %1 = tpu.iota {dimensions = array<i32: 0>} : vector<8x256xi32>
    %2 = vector.broadcast %0 : i32 to vector<8x256xi32>
    %3 = arith.addi %1, %2 : vector<8x256xi32>
    %4 = tpu.iota {dimensions = array<i32: 1>} : vector<8x256xi32>
    %c256_i32 = arith.constant 256 : i32
    %5 = vector.broadcast %c256_i32 : i32 to vector<8x256xi32>
    %6 = arith.muli %3, %5 : vector<8x256xi32>
    %7 = arith.addi %6, %4 : vector<8x256xi32>
    %c0 = arith.constant 0 : index
    %8 = memref.load %arg1[%c0] : memref<1xi32, #tpu.memory_space<smem>>
    %c-1640531535_i32 = arith.constant -1640531535 : i32
    %9 = arith.muli %8, %c-1640531535_i32 : i32
    %10 = vector.broadcast %9 : i32 to vector<8x256xi32>
    %11 = arith.xori %7, %10 : vector<8x256xi32>
    %c16_i32 = arith.constant 16 : i32
    %12 = vector.broadcast %c16_i32 : i32 to vector<8x256xi32>
    %13 = arith.shrsi %11, %12 : vector<8x256xi32>
    %c65535_i32 = arith.constant 65535 : i32
    %14 = vector.broadcast %c65535_i32 : i32 to vector<8x256xi32>
    %15 = arith.andi %13, %14 : vector<8x256xi32>
    %16 = arith.xori %11, %15 : vector<8x256xi32>
    %c-2048144789_i32 = arith.constant -2048144789 : i32
    %17 = vector.broadcast %c-2048144789_i32 : i32 to vector<8x256xi32>
    %18 = arith.muli %16, %17 : vector<8x256xi32>
    %c13_i32 = arith.constant 13 : i32
    %19 = vector.broadcast %c13_i32 : i32 to vector<8x256xi32>
    %20 = arith.shrsi %18, %19 : vector<8x256xi32>
    %c524287_i32 = arith.constant 524287 : i32
    %21 = vector.broadcast %c524287_i32 : i32 to vector<8x256xi32>
    %22 = arith.andi %20, %21 : vector<8x256xi32>
    %23 = arith.xori %18, %22 : vector<8x256xi32>
    %c-1028477387_i32 = arith.constant -1028477387 : i32
    %24 = vector.broadcast %c-1028477387_i32 : i32 to vector<8x256xi32>
    %25 = arith.muli %23, %24 : vector<8x256xi32>
    %c16_i32_0 = arith.constant 16 : i32
    %26 = vector.broadcast %c16_i32_0 : i32 to vector<8x256xi32>
    %27 = arith.shrsi %25, %26 : vector<8x256xi32>
    %c65535_i32_1 = arith.constant 65535 : i32
    %28 = vector.broadcast %c65535_i32_1 : i32 to vector<8x256xi32>
    %29 = arith.andi %27, %28 : vector<8x256xi32>
    %30 = arith.xori %25, %29 : vector<8x256xi32>
    %c2147483647_i32 = arith.constant 2147483647 : i32
    %31 = vector.broadcast %c2147483647_i32 : i32 to vector<8x256xi32>
    %32 = arith.andi %30, %31 : vector<8x256xi32>
    %c0_2 = arith.constant 0 : index
    %c0_3 = arith.constant 0 : index
    %33 = vector.load %arg2[%c0_2, %c0_3] : memref<8x1xi32, #tpu.memory_space<vmem>>, vector<8x1xi32>
    %34 = vector.broadcast %33 : vector<8x1xi32> to vector<8x256xi32>
    %35 = arith.cmpi sle, %32, %34 : vector<8x256xi32>
    %c0_4 = arith.constant 0 : index
    %c0_5 = arith.constant 0 : index
    %36 = vector.load %arg3[%c0_4, %c0_5] : memref<8x256xf32, #tpu.memory_space<vmem>>, vector<8x256xf32>
    %cst = arith.constant 0.000000e+00 : f32
    %37 = vector.broadcast %cst : f32 to vector<8x256xf32>
    %38 = arith.select %35, %36, %37 : vector<8x256xi1>, vector<8x256xf32>
    %c0_6 = arith.constant 0 : index
    %c0_7 = arith.constant 0 : index
    %39 = vector.load %arg4[%c0_6, %c0_7] : memref<8x256xf32, #tpu.memory_space<vmem>>, vector<8x256xf32>
    tpu.vector_store %arg4[%c0_6, %c0_7], %38 {strides = array<i32>} : memref<8x256xf32, #tpu.memory_space<vmem>>, vector<8x256xf32>,
    return
  }
  func.func @transform_0(%arg0: i32, %arg1: memref<1xi32, #tpu.memory_space<smem>>) -> (i32, i32) {
    %c0_i32 = arith.constant 0 : i32
    %c0_i32_0 = arith.constant 0 : i32
    return %arg0, %c0_i32 : i32, i32
  }
  func.func @transform_1(%arg0: i32, %arg1: memref<1xi32, #tpu.memory_space<smem>>) -> (i32, i32) {
    %c0_i32 = arith.constant 0 : i32
    %c0_i32_0 = arith.constant 0 : i32
    return %arg0, %c0_i32 : i32, i32
  }
  func.func @transform_2(%arg0: i32, %arg1: memref<1xi32, #tpu.memory_space<smem>>) -> (i32, i32) {
    %c0_i32 = arith.constant 0 : i32
    %c0_i32_0 = arith.constant 0 : i32
    return %arg0, %c0_i32 : i32, i32
  }
}

</mosaic_0001>

<llo_original>
// kernel: tpu_custom_call.1
$region0: #{tpu_custom_call.1}
  #allocation0 [shape = 'u32[]', space=smem, size = 0x4, offset = 0x4, fixed_abs, tag = 'smem constant byte address 0x4 - core index']
  #allocation1 [shape = 'u32[144,128]{1,0:T(1,128)}', space=vmem, size = 0x12000, scoped, tag = 'internal scratch']
  #allocation2 [shape = 's32[1]{0}', space=sflag, size = 0x4, scoped, tag = 'scoped memory for tpu_custom_call.1']
  #allocation3 [shape = 's32[1]{0:T(128)S(6)}', space=smem, size = 0x200, scoped, tag = 'prefetched SMEM operand 0']
  %s0 = inlined_call_operand.<no memory space> [shape: s32[1], index: 0, kind: input, shape index: {}]
  %s1 = inlined_call_operand.vmem [shape: s32[8,1], index: 1, kind: input, shape index: {}]
  %s2 = inlined_call_operand.vmem [shape: f32[8,256], index: 2, kind: input, shape index: {}]
  %s3 = inlined_call_operand.hbm [shape: f32[8,256], index: 3, kind: output, shape index: {}]
  %s4 = sld [smem:[#allocation0]]
  $region18: #{tpu_custom_call.1} parent=0
    _
  %s6 = ssub.s32 1, %s4
  %s7 = scalar_select 0, %s6, %s4
  %8 = sst [smem:[#allocation3]] %s0
  $region1: #{tpu_custom_call.1} parent=0
    #allocation4 [shape = 'u8[8192]{0}', space=vmem, size = 0x2000, scoped, tag = 'output window, operand 0, single buffered']
    #allocation5 [shape = 's32[1]{0}', space=sflag, size = 0x4, scoped, tag = 'scoped memory for tpu_custom_call.1']
    %9 = vsyncpa [#allocation5], 0
    // Predicated region
    $region2: #{tpu_custom_call.1} parent=1 // pred_check
      _
    $region3: #{tpu_custom_call.1} parent=1 // pred_check_branch
      %11 = sbr.rel (0) target = $region5
    $region4: #{tpu_custom_call.1} parent=1 // pred_region
      _
    $region5: #{tpu_custom_call.1} parent=1 // pred_fallthru
      _
    // Predicated region
    $region6: #{tpu_custom_call.1} parent=1 // pred_check
      _
    $region7: #{tpu_custom_call.1} parent=1 // pred_check_branch
      %13 = sbr.rel (0) target = $region9
    $region8: #{tpu_custom_call.1} parent=1 // pred_region
      _
    $region9: #{tpu_custom_call.1} parent=1 // pred_fallthru
      _
    %s14 = smul.u32 0, 8
    %v15 = vlaneseq
    %v16 = vshrl.u32 %v15, 7
    %v17 = vstv %s14
    %v18 = vadd.s32 %v16, %v17
    %v19 = vlaneseq
    %v20 = vand.u32 %v19, 127
    %v21 = vadd.s32 %v20, 128
    %v22 = vmul.u32 %v18, 256
    %v23 = vadd.s32 %v22, %v20
    %v24 = vadd.s32 %v22, %v21
    %s25 = sld [smem:[#allocation3]]
    %s26 = smul.u32 %s25, 2654435761
    %v27 = vstv %s26
    %v28 = vxor.u32 %v23, %v27
    %v29 = vxor.u32 %v24, %v27
    %v30 = vshra.s32 %v28, 16
    %v31 = vshra.s32 %v29, 16
    %v32 = vand.u32 %v30, 65535
    %v33 = vand.u32 %v31, 65535
    %v34 = vxor.u32 %v28, %v32
    %v35 = vxor.u32 %v29, %v33
    %v36 = vmul.u32 %v34, 2246822507
    %v37 = vmul.u32 %v35, 2246822507
    %v38 = vshra.s32 %v36, 13
    %v39 = vshra.s32 %v37, 13
    %v40 = vand.u32 %v38, 524287
    %v41 = vand.u32 %v39, 524287
    %v42 = vxor.u32 %v36, %v40
    %v43 = vxor.u32 %v37, %v41
    %v44 = vmul.u32 %v42, 3266489909
    %v45 = vmul.u32 %v43, 3266489909
    %v46 = vshra.s32 %v44, 16
    %v47 = vshra.s32 %v45, 16
    %v48 = vand.u32 %v46, 65535
    %v49 = vand.u32 %v47, 65535
    %v50 = vxor.u32 %v44, %v48
    %v51 = vxor.u32 %v45, %v49
    %v52 = vand.u32 %v50, 2147483647
    %v53 = vand.u32 %v51, 2147483647
    %v54 = vld [vmem:[%s1] sm:$0xff]
    %55 = vset.pattern.permute.xlu0 0
    %56 = vperm.xlu0 %55, %v54
    %v57 = vpop.permute.xlu0 %56
    %vm58 = vcmp.le.s32.totalorder %v52, %v57
    %vm59 = vcmp.le.s32.totalorder %v53, %v57
    %v60 = vld [vmem:[%s2] sm:$0xff]
    %v61 = vld [vmem:[%s2 + $0x8] sm:$0xff]
    %v62 = vsel %vm58, %v60, 0.0
    %v63 = vsel %vm59, %v61, 0.0
    %64 = vst [vmem:[#allocation4] sm:$0xff] %v62
    %65 = vst [vmem:[#allocation4 + $0x8] sm:$0xff] %v63
    // Predicated region
    $region10: #{tpu_custom_call.1} parent=1 // pred_check
      _
    $region11: #{tpu_custom_call.1} parent=1 // pred_check_branch
      %67 = sbr.rel (0) target = $region13
    $region12: #{tpu_custom_call.1} parent=1 // pred_region
      %s69 = ssub.s32 256, 256
      %70 = vsyncadd [#allocation5], %s69
      %s72 = sshll.u32 [#allocation4], 4
      %s73 = int_to_ptr.vmem [resolvable:$true] %s72
      %75 = dma.vmem_to_hbm [thread:$0]  %s73, 256, %s3, [#allocation5]
    $region13: #{tpu_custom_call.1} parent=1 // pred_fallthru
      _
    // Predicated region
    $region14: #{tpu_custom_call.1} parent=1 // pred_check
      _
    $region15: #{tpu_custom_call.1} parent=1 // pred_check_branch
      %77 = sbr.rel (0) target = $region17
    $region16: #{tpu_custom_call.1} parent=1 // pred_region
      %78 = dma.done [#allocation5], 256
    $region17: #{tpu_custom_call.1} parent=1 // pred_fallthru
      _
    %79 = vsyncpa [#allocation5], 1

</llo_original>
